<compile_context>
chip_gen: v5e
topology: v5e:2x2
jax: 0.10.0
libtpu: 0.0.40
codegen_flags: <defaults>
</compile_context>

<pallas_src>
import functools

import jax
import jax.numpy as jnp
from jax.experimental import pallas as pl
from jax.experimental.pallas import tpu as pltpu

BLOCK_NUM = 3              # block_num
LOOPBACK = 5               # loopback_window
HORIZON = 2                # future_horizen
FC = 8                     # fc_layers = [8, 8, 8, 8]

# Batch-tile cap: 64K lanes keeps double-buffered VMEM (~12 MiB f32) far under
# v7x's 64 MiB while making per-step HBM traffic (~3 MiB) >> 0.35 us overhead.
_TB_CAP = 64 * 1024


def _round_up(n, m):
    return ((n + m - 1) // m) * m


# ----------------------------------------------------------------------------
# Host-side affine fold (weights are tiny; runs once, fused ahead of the kernel)
# ----------------------------------------------------------------------------
def fold_params(params):
    """Collapse the activation-free BlockStack into (A, c, D, e).

    y_sum = x @ A + c      A: (L, H), c: (H,)
    x_hat = x @ D + e      D: (L, L), e: (L,)   (last block's x_hat)
    """
    A = jnp.zeros((LOOPBACK, HORIZON), jnp.float32)
    c = jnp.zeros((HORIZON,), jnp.float32)
    P = jnp.eye(LOOPBACK, dtype=jnp.float32)          # x_prev = x @ P + q
    q = jnp.zeros((LOOPBACK,), jnp.float32)
    D = jnp.zeros((LOOPBACK, LOOPBACK), jnp.float32)
    e = jnp.zeros((LOOPBACK,), jnp.float32)

    for blk in range(BLOCK_NUM):
        # Fold the four hidden Linears of this block: h4 = x_prev @ M + m
        M = params["w1"][blk]
        m = params["b1"][blk][0]
        for wname, bname in (("w2", "b2"), ("w3", "b3"), ("w4", "b4")):
            M = M @ params[wname][blk]
            m = m @ params[wname][blk] + params[bname][blk][0]
        # Heads (still affine in x_prev)
        Y = M @ params["wy"][blk]
        dy = m @ params["wy"][blk] + params["by"][blk][0]
        X = M @ params["wx"][blk]
        dx = m @ params["wx"][blk] + params["bx"][blk][0]
        # Compose with the running affine map x_prev = x @ P + q
        A = A + P @ Y
        c = c + (q @ Y + dy)
        D = P @ X
        e = q @ X + dx
        # Residual update: x_prev <- x_prev - x_hat
        P = P - D
        q = q - e
    return A, c, D, e


# ----------------------------------------------------------------------------
# Pallas kernel: one lane-dense fused GEMM per batch tile (batch on lanes).
# ----------------------------------------------------------------------------
def _block_stack_kernel(wy_ref, by_ref, wx_ref, bx_ref, xT_ref,
                        yT_ref, xhT_ref):
    # wy_ref : (H, L)  VMEM-resident folded y-head weight (f32)
    # by_ref : (H, 1)  folded y-head bias (lane-broadcast)
    # wx_ref : (L, L)  VMEM-resident folded x_hat weight
    # bx_ref : (L, 1)  folded x_hat bias
    # xT_ref : (L, TB) batch tile in the caller's dtype (batch on lanes)
    # yT_ref : (H, TB), xhT_ref: (L, TB)  outputs in the caller's dtype
    xv = xT_ref[...].astype(jnp.float32)
    yT_ref[...] = (
        jnp.dot(wy_ref[...], xv, preferred_element_type=jnp.float32)
        + by_ref[...]
    ).astype(yT_ref.dtype)
    xhT_ref[...] = (
        jnp.dot(wx_ref[...], xv, preferred_element_type=jnp.float32)
        + bx_ref[...]
    ).astype(xhT_ref.dtype)


# ----------------------------------------------------------------------------
# Primary (lane-dense) entry point: xT is (L, B) with B a multiple of 128.
# Producers should write x transposed and consumers read the transposed
# outputs directly -- this avoids any wrapper-side HBM layout passes.
# ----------------------------------------------------------------------------
@functools.partial(jax.jit, static_argnames=("batch_tile", "core_parallel"))
def block_stack_forward_T(xT, params, *, batch_tile=None, core_parallel=False):
    """xT: (LOOPBACK, B) -> (y_sum^T (HORIZON, B), x_hat^T (LOOPBACK, B))."""
    L, B = xT.shape
    assert L == LOOPBACK
    assert B % 128 == 0, "lane-dense contract requires B to be a multiple of 128"

    if batch_tile is not None:
        assert batch_tile % 128 == 0, "batch_tile must be a multiple of 128"
        TB = min(batch_tile, B)
    else:
        TB = min(_TB_CAP, B)

    A, c, D, e = fold_params(params)
    WyT = A.T.astype(jnp.float32)            # (H, L)
    byc = c[:, None].astype(jnp.float32)     # (H, 1)
    WxT = D.T.astype(jnp.float32)            # (L, L)
    bxc = e[:, None].astype(jnp.float32)     # (L, 1)

    out_dtype = xT.dtype
    grid = (pl.cdiv(B, TB),)

    # Use CORE_PARALLEL on v7x (2 TensorCores) to actually split the batch-tile
    # grid across cores; plain PARALLEL elsewhere.
    sem = (pltpu.CORE_PARALLEL,) if core_parallel else (pltpu.PARALLEL,)

    yT, xhT = pl.pallas_call(
        _block_stack_kernel,
        out_shape=(
            jax.ShapeDtypeStruct((HORIZON, B), out_dtype),
            jax.ShapeDtypeStruct((LOOPBACK, B), out_dtype),
        ),
        grid_spec=pltpu.PrefetchScalarGridSpec(
            num_scalar_prefetch=0,
            grid=grid,
            in_specs=[
                pl.BlockSpec((HORIZON, LOOPBACK), lambda i: (0, 0)),   # Wy, resident
                pl.BlockSpec((HORIZON, 1), lambda i: (0, 0)),          # by, resident
                pl.BlockSpec((LOOPBACK, LOOPBACK), lambda i: (0, 0)),  # Wx, resident
                pl.BlockSpec((LOOPBACK, 1), lambda i: (0, 0)),         # bx, resident
                pl.BlockSpec((LOOPBACK, TB), lambda i: (0, i)),        # x^T tile
            ],
            out_specs=[
                pl.BlockSpec((HORIZON, TB), lambda i: (0, i)),
                pl.BlockSpec((LOOPBACK, TB), lambda i: (0, i)),
            ],
        ),
        compiler_params=pltpu.CompilerParams(
            dimension_semantics=sem,
            # 48 MiB: explicit vs. v5e's 16 MiB scoped default, headroom under
            # v7x's 64 MiB physical VMEM; double-buffered footprint at the 64K
            # tile cap is only ~12 MiB.
            vmem_limit_bytes=48 * 1024 * 1024,
        ),
    )(WyT, byc, WxT, bxc, xT)
    return yT, xhT


# ----------------------------------------------------------------------------
# (B, L) compatibility wrapper matching the PyTorch interface.  The single
# pad+transpose each way happens under jit so it fuses into one copy per
# operand; the caller's dtype is preserved end-to-end.
# ----------------------------------------------------------------------------
@functools.partial(
    jax.jit, static_argnames=("batch_tile", "core_parallel", "min_pallas_batch"))
def block_stack_forward(x, params, *, batch_tile=None, core_parallel=False,
                        min_pallas_batch=0):
    """x: (B, LOOPBACK) -> (y_sum (B, HORIZON), x_hat (B, LOOPBACK))."""
    B, L = x.shape
    assert L == LOOPBACK

    if B < min_pallas_batch:
        # Tiny-batch fast path: a plain XLA affine map beats the fixed
        # pallas_call launch/step overhead (per the perf review, callers with
        # B below a few thousand should set min_pallas_batch accordingly).
        A, c, D, e = fold_params(params)
        xf = x.astype(jnp.float32)
        return (xf @ A + c).astype(x.dtype), (xf @ D + e).astype(x.dtype)

    Bp = _round_up(B, 128)
    # Pad + transpose fuse into the single operand copy feeding pallas_call.
    xT = jnp.pad(x, ((0, Bp - B), (0, 0))).T          # (L, Bp), batch on lanes
    yT, xhT = block_stack_forward_T(
        xT, params, batch_tile=batch_tile, core_parallel=core_parallel)
    return yT[:, :B].T, xhT[:, :B].T


# ----------------------------------------------------------------------------
# Parameter init + pure-JAX (unfolded) reference mirroring the PyTorch forward.
# ----------------------------------------------------------------------------
def init_params(key):
    """PyTorch-Linear-like uniform init, stacked over blocks; weights (in, out)."""
    layer_dims = [
        ("w1", "b1", LOOPBACK, FC),
        ("w2", "b2", FC, FC),
        ("w3", "b3", FC, FC),
        ("w4", "b4", FC, FC),
        ("wy", "by", FC, HORIZON),
        ("wx", "bx", FC, LOOPBACK),
    ]
    params = {}
    for wname, bname, din, dout in layer_dims:
        key, kw, kb = jax.random.split(key, 3)
        bound = 1.0 / (din ** 0.5)
        params[wname] = jax.random.uniform(
            kw, (BLOCK_NUM, din, dout), jnp.float32, -bound, bound)
        params[bname] = jax.random.uniform(
            kb, (BLOCK_NUM, 1, dout), jnp.float32, -bound, bound)
    return params


def reference_forward(x, params):
    """Unfolded pure-JAX reference matching the PyTorch BlockStack.forward."""
    x_prev = x.astype(jnp.float32)
    y_sum = jnp.zeros((x.shape[0], HORIZON), jnp.float32)
    x_hat = jnp.zeros((x.shape[0], LOOPBACK), jnp.float32)
    for blk in range(BLOCK_NUM):
        h = x_prev @ params["w1"][blk] + params["b1"][blk]
        h = h @ params["w2"][blk] + params["b2"][blk]
        h = h @ params["w3"][blk] + params["b3"][blk]
        h = h @ params["w4"][blk] + params["b4"][blk]
        y_hat = h @ params["wy"][blk] + params["by"][blk]
        x_hat = h @ params["wx"][blk] + params["bx"][blk]
        x_prev = x_prev - x_hat
        y_sum = y_sum + y_hat
    return y_sum, x_hat


if __name__ == "__main__":
    key = jax.random.PRNGKey(0)
    key, kp, k1, k2, k3 = jax.random.split(key, 5)
    params = init_params(kp)

    # 1) Small batch through the (B, L) compatibility wrapper (one 128-lane tile).
    B1 = 8
    x1 = jax.random.normal(k1, (B1, LOOPBACK), jnp.float32)
    y1, xh1 = block_stack_forward(x1, params)
    jax.block_until_ready((y1, xh1))
    y1_ref, xh1_ref = reference_forward(x1, params)
    assert y1.shape == (B1, HORIZON) and xh1.shape == (B1, LOOPBACK)
    assert jnp.allclose(y1, y1_ref, rtol=1e-4, atol=1e-5)
    assert jnp.allclose(xh1, xh1_ref, rtol=1e-4, atol=1e-5)

    # 2) Lane-dense transposed contract (primary entry point), multi-tile grid
    #    (grid=4) to exercise pipelining + VMEM-resident folded weights.
    B2 = 4096
    x2 = jax.random.normal(k2, (B2, LOOPBACK), jnp.float32)
    y2T, xh2T = block_stack_forward_T(x2.T, params, batch_tile=1024)
    jax.block_until_ready((y2T, xh2T))
    y2_ref, xh2_ref = reference_forward(x2, params)
    assert y2T.shape == (HORIZON, B2) and xh2T.shape == (LOOPBACK, B2)
    assert jnp.allclose(y2T.T, y2_ref, rtol=1e-4, atol=1e-5)
    assert jnp.allclose(xh2T.T, xh2_ref, rtol=1e-4, atol=1e-5)

    # 3) Ragged batch through the wrapper (pads to 1024 lanes, single tile).
    B3 = 1000
    x3 = jax.random.normal(k3, (B3, LOOPBACK), jnp.float32)
    y3, xh3 = block_stack_forward(x3, params)
    jax.block_until_ready((y3, xh3))
    y3_ref, xh3_ref = reference_forward(x3, params)
    assert y3.shape == (B3, HORIZON) and xh3.shape == (B3, LOOPBACK)
    assert jnp.allclose(y3, y3_ref, rtol=1e-4, atol=1e-5)
    assert jnp.allclose(xh3, xh3_ref, rtol=1e-4, atol=1e-5)

    print("KERNEL_OK")
</pallas_src>

<mosaic_0001>
module attributes {stable_mosaic.version = 11 : i64} {
  func.func @_block_stack_kernel(%arg0: i32, %arg1: memref<2x5xf32, #tpu.memory_space<vmem>>, %arg2: memref<2x1xf32, #tpu.memory_space<vmem>>, %arg3: memref<5x5xf32, #tpu.memory_space<vmem>>, %arg4: memref<5x1xf32, #tpu.memory_space<vmem>>, %arg5: memref<5x128xf32, #tpu.memory_space<vmem>>, %arg6: memref<2x128xf32, #tpu.memory_space<vmem>>, %arg7: memref<5x128xf32, #tpu.memory_space<vmem>>) attributes {dimension_semantics = [#tpu.dimension_semantics<parallel>], iteration_bounds = array<i64: 1>, scalar_prefetch = 0 : i64, scratch_operands = 0 : i64, tpu.core_type = #tpu.core_type<tc>, window_params = [{pipeline_mode = #tpu.pipeline_mode<synchronous>, transform_indices = @transform_0, window_bounds = array<i64: 2, 5>}, {pipeline_mode = #tpu.pipeline_mode<synchronous>, transform_indices = @transform_1, window_bounds = array<i64: 2, 1>}, {pipeline_mode = #tpu.pipeline_mode<synchronous>, transform_indices = @transform_2, window_bounds = array<i64: 5, 5>}, {pipeline_mode = #tpu.pipeline_mode<synchronous>, transform_indices = @transform_3, window_bounds = array<i64: 5, 1>}, {transform_indices = @transform_4, window_bounds = array<i64: 5, 128>}, {transform_indices = @transform_5, window_bounds = array<i64: 2, 128>}, {transform_indices = @transform_6, window_bounds = array<i64: 5, 128>}]} {
    %c0 = arith.constant 0 : index
    %c0_0 = arith.constant 0 : index
    %0 = vector.load %arg5[%c0, %c0_0] : memref<5x128xf32, #tpu.memory_space<vmem>>, vector<5x128xf32>
    %c0_1 = arith.constant 0 : index
    %c0_2 = arith.constant 0 : index
    %1 = vector.load %arg1[%c0_1, %c0_2] : memref<2x5xf32, #tpu.memory_space<vmem>>, vector<2x5xf32>
    %cst = arith.constant dense<0.000000e+00> : vector<2x128xf32>
    %2 = tpu.matmul %1, %0, %cst {dimension_numbers = #tpu.dot_dimension_numbers<[1], [0], [0], [1], [0, 0, 1, 1], [], []>} : vector<2x5xf32>, vector<5x128xf32>, vector<2x128xf32> -> vector<2x128xf32>
    %c0_3 = arith.constant 0 : index
    %c0_4 = arith.constant 0 : index
    %3 = vector.load %arg2[%c0_3, %c0_4] : memref<2x1xf32, #tpu.memory_space<vmem>>, vector<2x1xf32>
    %4 = vector.broadcast %3 : vector<2x1xf32> to vector<2x128xf32>
    %5 = arith.addf %2, %4 : vector<2x128xf32>
    %c0_5 = arith.constant 0 : index
    %c0_6 = arith.constant 0 : index
    %6 = vector.load %arg6[%c0_5, %c0_6] : memref<2x128xf32, #tpu.memory_space<vmem>>, vector<2x128xf32>
    tpu.vector_store %arg6[%c0_5, %c0_6], %5 {strides = array<i32>} : memref<2x128xf32, #tpu.memory_space<vmem>>, vector<2x128xf32>,
    %c0_7 = arith.constant 0 : index
    %c0_8 = arith.constant 0 : index
    %7 = vector.load %arg3[%c0_7, %c0_8] : memref<5x5xf32, #tpu.memory_space<vmem>>, vector<5x5xf32>
    %cst_9 = arith.constant dense<0.000000e+00> : vector<5x128xf32>
    %8 = tpu.matmul %7, %0, %cst_9 {dimension_numbers = #tpu.dot_dimension_numbers<[1], [0], [0], [1], [0, 0, 1, 1], [], []>} : vector<5x5xf32>, vector<5x128xf32>, vector<5x128xf32> -> vector<5x128xf32>
    %c0_10 = arith.constant 0 : index
    %c0_11 = arith.constant 0 : index
    %9 = vector.load %arg4[%c0_10, %c0_11] : memref<5x1xf32, #tpu.memory_space<vmem>>, vector<5x1xf32>
    %10 = vector.broadcast %9 : vector<5x1xf32> to vector<5x128xf32>
    %11 = arith.addf %8, %10 : vector<5x128xf32>
    %c0_12 = arith.constant 0 : index
    %c0_13 = arith.constant 0 : index
    %12 = vector.load %arg7[%c0_12, %c0_13] : memref<5x128xf32, #tpu.memory_space<vmem>>, vector<5x128xf32>
    tpu.vector_store %arg7[%c0_12, %c0_13], %11 {strides = array<i32>} : memref<5x128xf32, #tpu.memory_space<vmem>>, vector<5x128xf32>,
    return
  }
  func.func @transform_0(%arg0: i32) -> (i32, i32) {
    %c0_i32 = arith.constant 0 : i32
    %c0_i32_0 = arith.constant 0 : i32
    %c0_i32_1 = arith.constant 0 : i32
    return %c0_i32, %c0_i32_0 : i32, i32
  }
  func.func @transform_1(%arg0: i32) -> (i32, i32) {
    %c0_i32 = arith.constant 0 : i32
    %c0_i32_0 = arith.constant 0 : i32
    %c0_i32_1 = arith.constant 0 : i32
    return %c0_i32, %c0_i32_0 : i32, i32
  }
  func.func @transform_2(%arg0: i32) -> (i32, i32) {
    %c0_i32 = arith.constant 0 : i32
    %c0_i32_0 = arith.constant 0 : i32
    %c0_i32_1 = arith.constant 0 : i32
    return %c0_i32, %c0_i32_0 : i32, i32
  }
  func.func @transform_3(%arg0: i32) -> (i32, i32) {
    %c0_i32 = arith.constant 0 : i32
    %c0_i32_0 = arith.constant 0 : i32
    %c0_i32_1 = arith.constant 0 : i32
    return %c0_i32, %c0_i32_0 : i32, i32
  }
  func.func @transform_4(%arg0: i32) -> (i32, i32) {
    %c0_i32 = arith.constant 0 : i32
    %c0_i32_0 = arith.constant 0 : i32
    return %c0_i32, %arg0 : i32, i32
  }
  func.func @transform_5(%arg0: i32) -> (i32, i32) {
    %c0_i32 = arith.constant 0 : i32
    %c0_i32_0 = arith.constant 0 : i32
    return %c0_i32, %arg0 : i32, i32
  }
  func.func @transform_6(%arg0: i32) -> (i32, i32) {
    %c0_i32 = arith.constant 0 : i32
    %c0_i32_0 = arith.constant 0 : i32
    return %c0_i32, %arg0 : i32, i32
  }
}

</mosaic_0001>

<llo_original>
// kernel: block_stack_forward_T.1
$region0: #{block_stack_forward_T.1}
  #allocation0 [shape = 'u32[]', space=smem, size = 0x4, offset = 0x4, fixed_abs, tag = 'smem constant byte address 0x4 - core index']
  #allocation1 [shape = 'u32[72,128]{1,0:T(1,128)}', space=vmem, size = 0x9000, scoped, tag = 'internal scratch']
  %s0 = inlined_call_operand.vmem [shape: f32[2,5], index: 0, kind: input, shape index: {}]
  %s1 = inlined_call_operand.vmem [shape: f32[2,1], index: 1, kind: input, shape index: {}]
  %s2 = inlined_call_operand.vmem [shape: f32[5,5], index: 2, kind: input, shape index: {}]
  %s3 = inlined_call_operand.vmem [shape: f32[5,1], index: 3, kind: input, shape index: {}]
  %s4 = inlined_call_operand.vmem [shape: f32[5,128], index: 4, kind: input, shape index: {}]
  %s5 = inlined_call_operand.hbm [shape: f32[2,128], index: 5, kind: output, shape index: {0}]
  %s6 = inlined_call_operand.hbm [shape: f32[5,128], index: 6, kind: output, shape index: {1}]
  %7 = xla_tuple %s5, %s6
  %s8 = sld [smem:[#allocation0]]
  $region38: #{block_stack_forward_T.1} parent=0
    _
  %s10 = ssub.s32 1, %s8
  %s11 = scalar_select 0, %s10, %s8
  $region1: #{block_stack_forward_T.1} parent=0
    #allocation2 [shape = 'u8[1024]{0}', space=vmem, size = 0x400, scoped, tag = 'output window, operand 0, single buffered']
    #allocation3 [shape = 's32[1]{0}', space=sflag, size = 0x4, scoped, tag = 'scoped memory for block_stack_forward_T.1']
    #allocation4 [shape = 'u8[4096]{0}', space=vmem, size = 0x1000, scoped, tag = 'output window, operand 1, single buffered']
    #allocation5 [shape = 's32[1]{0}', space=sflag, size = 0x4, scoped, tag = 'scoped memory for block_stack_forward_T.1']
    %12 = vsyncpa [#allocation3], 0
    %13 = vsyncpa [#allocation5], 0
    // Predicated region
    $region2: #{block_stack_forward_T.1} parent=1 // pred_check
      _
    $region3: #{block_stack_forward_T.1} parent=1 // pred_check_branch
      %15 = sbr.rel (0) target = $region5
    $region4: #{block_stack_forward_T.1} parent=1 // pred_region
      _
    $region5: #{block_stack_forward_T.1} parent=1 // pred_fallthru
      _
    // Predicated region
    $region6: #{block_stack_forward_T.1} parent=1 // pred_check
      _
    $region7: #{block_stack_forward_T.1} parent=1 // pred_check_branch
      %17 = sbr.rel (0) target = $region9
    $region8: #{block_stack_forward_T.1} parent=1 // pred_region
      _
    $region9: #{block_stack_forward_T.1} parent=1 // pred_fallthru
      _
    // Predicated region
    $region10: #{block_stack_forward_T.1} parent=1 // pred_check
      _
    $region11: #{block_stack_forward_T.1} parent=1 // pred_check_branch
      %19 = sbr.rel (0) target = $region13
    $region12: #{block_stack_forward_T.1} parent=1 // pred_region
      _
    $region13: #{block_stack_forward_T.1} parent=1 // pred_fallthru
      _
    // Predicated region
    $region14: #{block_stack_forward_T.1} parent=1 // pred_check
      _
    $region15: #{block_stack_forward_T.1} parent=1 // pred_check_branch
      %21 = sbr.rel (0) target = $region17
    $region16: #{block_stack_forward_T.1} parent=1 // pred_region
      _
    $region17: #{block_stack_forward_T.1} parent=1 // pred_fallthru
      _
    // Predicated region
    $region18: #{block_stack_forward_T.1} parent=1 // pred_check
      _
    $region19: #{block_stack_forward_T.1} parent=1 // pred_check_branch
      %23 = sbr.rel (0) target = $region21
    $region20: #{block_stack_forward_T.1} parent=1 // pred_region
      _
    $region21: #{block_stack_forward_T.1} parent=1 // pred_fallthru
      _
    %v24 = vld [vmem:[%s4] sm:$0x1f]
    %v25 = vld [vmem:[%s0] sm:$0x3]
    %v26 = vld [vmem:[%s1] sm:$0x3]
    %28 = vset.pattern.permute.xlu0 0
    %29 = vperm.xlu0 %28, %v26
    %v30 = vpop.permute.xlu0 %29
    %vm32 = vcmask 39936
    %v34 = vsel %vm32, %v25, 0
    %vm36 = vcmask 1044480
    %v38 = vsel %vm36, %v24, 0
    %40 = vmatpush.msra.mxu0 0.0
    %41 = vmatpush.msra.mxu0 0.0
    %42 = vmatpush.msra.mxu0 0.0
    %43 = vmatpush.msra.mxu0 0.0
    %44 = vmatpush.msra.mxu0 0.0
    %45 = vmatpush.msra.mxu0 0.0
    %46 = vmatpush.msra.mxu0 0.0
    %47 = vmatpush.msra.mxu0 0.0
    %48 = vmatpush.msra.mxu0 0.0
    %49 = vmatpush.msra.mxu0 0.0
    %50 = vmatpush.msra.mxu0 0.0
    %51 = vmatpush.msra.mxu0 0.0
    %52 = vmatpush.msra.mxu0 0.0
    %53 = vmatpush.msra.mxu0 0.0
    %54 = vmatpush.msra.mxu0 0.0
    %55 = vmatpush.msra.mxu0 %v38
    %56 = vmatmul.f32.gmra.mxu0 %v34
    %v57 = vpop.f32.mrf.mxu0
    %v58 = vadd.f32 %v30, %v57
    %59 = vdwg.mxu0
    %60 = vst [vmem:[#allocation2] sm:$0x3] %v58
    %v61 = vld [vmem:[%s2] sm:$0x1f]
    %v62 = vld [vmem:[%s3] sm:$0x1f]
    %64 = vset.pattern.permute.xlu0 0
    %65 = vperm.xlu0 %64, %v62
    %v66 = vpop.permute.xlu0 %65
    %v69 = vsel %vm32, %v61, 0
    %71 = vmatpush.msra.mxu0 0.0
    %72 = vmatpush.msra.mxu0 0.0
    %73 = vmatpush.msra.mxu0 0.0
    %74 = vmatpush.msra.mxu0 0.0
    %75 = vmatpush.msra.mxu0 0.0
    %76 = vmatpush.msra.mxu0 0.0
    %77 = vmatpush.msra.mxu0 0.0
    %78 = vmatpush.msra.mxu0 0.0
    %79 = vmatpush.msra.mxu0 0.0
    %80 = vmatpush.msra.mxu0 0.0
    %81 = vmatpush.msra.mxu0 0.0
    %82 = vmatpush.msra.mxu0 0.0
    %83 = vmatpush.msra.mxu0 0.0
    %84 = vmatpush.msra.mxu0 0.0
    %85 = vmatpush.msra.mxu0 0.0
    %86 = vmatpush.msra.mxu0 %v38
    %87 = vmatmul.f32.gmra.mxu0 %v69
    %v88 = vpop.f32.mrf.mxu0
    %v89 = vadd.f32 %v66, %v88
    %90 = vdwg.mxu0
    %91 = vst [vmem:[#allocation4] sm:$0x1f] %v89
    // Predicated region
    $region22: #{block_stack_forward_T.1} parent=1 // pred_check
      _
    $region23: #{block_stack_forward_T.1} parent=1 // pred_check_branch
      %93 = sbr.rel (0) target = $region25
    $region24: #{block_stack_forward_T.1} parent=1 // pred_region
      %95 = vsyncadd [#allocation3], 0
      %s97 = sshll.u32 [#allocation2], 4
      %s98 = int_to_ptr.vmem [resolvable:$true] %s97
      %s99 = sshll.u32 %s5, 4
      %s100 = int_to_ptr.hbm [resolvable:$true] %s99
      %102 = dma.vmem_to_hbm [thread:$0]  %s98, 32, %s100, [#allocation3]
    $region25: #{block_stack_forward_T.1} parent=1 // pred_fallthru
      _
    // Predicated region
    $region26: #{block_stack_forward_T.1} parent=1 // pred_check
      _
    $region27: #{block_stack_forward_T.1} parent=1 // pred_check_branch
      %104 = sbr.rel (0) target = $region29
    $region28: #{block_stack_forward_T.1} parent=1 // pred_region
      %106 = vsyncadd [#allocation5], 0
      %s108 = sshll.u32 [#allocation4], 4
      %s109 = int_to_ptr.vmem [resolvable:$true] %s108
      %s110 = sshll.u32 %s6, 4
      %s111 = int_to_ptr.hbm [resolvable:$true] %s110
      %113 = dma.vmem_to_hbm [thread:$0]  %s109, 128, %s111, [#allocation5]
    $region29: #{block_stack_forward_T.1} parent=1 // pred_fallthru
      _
    // Predicated region
    $region30: #{block_stack_forward_T.1} parent=1 // pred_check
      _
    $region31: #{block_stack_forward_T.1} parent=1 // pred_check_branch
      %115 = sbr.rel (0) target = $region33
    $region32: #{block_stack_forward_T.1} parent=1 // pred_region
      %117 = dma.done [#allocation3], 32
    $region33: #{block_stack_forward_T.1} parent=1 // pred_fallthru
      _
    // Predicated region
    $region34: #{block_stack_forward_T.1} parent=1 // pred_check
      _
    $region35: #{block_stack_forward_T.1} parent=1 // pred_check_branch
      %119 = sbr.rel (0) target = $region37
    $region36: #{block_stack_forward_T.1} parent=1 // pred_region
      %121 = dma.done [#allocation5], 128
    $region37: #{block_stack_forward_T.1} parent=1 // pred_fallthru
      _
    %122 = vsyncpa [#allocation3], 1
    %123 = vsyncpa [#allocation5], 1

</llo_original>
